<compile_context>
chip_gen: v5e
topology: v5e:2x2
jax: 0.10.0
libtpu: 0.0.40
codegen_flags: <defaults>
</compile_context>

<pallas_src>
import functools

import jax
import jax.numpy as jnp
from jax.experimental import pallas as pl
from jax.experimental.pallas import tpu as pltpu


def _round_up(x, m):
    return ((x + m - 1) // m) * m


def _choose_tile(dim, hint):
    """Largest multiple of 128 that divides `dim` (a multiple of 128) and is <= hint."""
    if dim <= hint:
        return dim
    best = 128
    d = 256
    while d <= hint:
        if dim % d == 0:
            best = d
        d += 128
    return best


def _split_tile(t):
    """Largest multiple of 128 strictly smaller than t that divides t (or t itself)."""
    d = t - 128
    while d >= 128:
        if t % d == 0:
            return d
        d -= 128
    return t


def _linear1d_kernel(*refs, inv_sqrt, has_bias, acc_in_out):
    # Argument layout (static at trace time):
    #   inputs:  x (tm, tk), w (tk, tn), [bias (1, tn)]
    #   outputs: o (tm, tn)
    #   scratch: [acc (tm, tn) f32]  -- only when acc_in_out is False
    if has_bias:
        if acc_in_out:
            x_ref, w_ref, b_ref, o_ref = refs
            acc_ref = o_ref
        else:
            x_ref, w_ref, b_ref, o_ref, acc_ref = refs
    else:
        if acc_in_out:
            x_ref, w_ref, o_ref = refs
            acc_ref = o_ref
        else:
            x_ref, w_ref, o_ref, acc_ref = refs

    k = pl.program_id(2)

    @pl.when(k == 0)
    def _():
        acc_ref[...] = jnp.zeros_like(acc_ref)

    # Standard MXU layout: x (tm, tk) @ w (tk, tn); K on x lanes / w sublanes.
    # bf16 operands, f32 accumulation.
    acc_ref[...] += jnp.dot(x_ref[...], w_ref[...],
                            preferred_element_type=jnp.float32)

    @pl.when(k == pl.num_programs(2) - 1)
    def _():
        r = acc_ref[...] * inv_sqrt
        if has_bias:
            r = r + b_ref[...]          # bias already pre-scaled by 0.1
        o_ref[...] = r.astype(o_ref.dtype)


def prepare_linear1d_params(weight, bias=None, *, compute_dtype=jnp.bfloat16,
                            tn_hint=512, tk_hint=2048):
    """One-time parameter prep: pad, transpose and cast the weight; pre-scale bias.

    weight: (C_out, C_in), bias: (1, C_out) or None.
    """
    c_out, c_in = weight.shape
    np_ = _round_up(c_out, 128)          # output lane dim
    kp = _round_up(c_in, 128)            # contraction dim
    tn = _choose_tile(np_, tn_hint)      # divides np_ exactly (no re-pad)
    tk = _choose_tile(kp, tk_hint)       # divides kp exactly

    w_p = jnp.pad(weight.astype(jnp.float32),
                  ((0, np_ - c_out), (0, kp - c_in)))
    # Store transposed: (C_in_padded, C_out_padded) so the kernel's RHS is in
    # the canonical K-on-sublane layout (no in-kernel transpose / relayout).
    w_t = jnp.asarray(w_p.T, dtype=compute_dtype)

    b_p = None
    if bias is not None:
        b_scaled = (bias.astype(jnp.float32) * 0.1).reshape(1, -1)
        b_p = jnp.pad(b_scaled, ((0, 0), (0, np_ - c_out)))

    return dict(w=w_t, b=b_p, c_in=c_in, c_out=c_out,
                tn=tn, tk=tk, compute_dtype=compute_dtype)


def linear1d_apply(x, params, *, tm_hint=512):
    """Apply Linear1d with pre-prepared params. x: (B, C_in) -> (B, C_out)."""
    B, c_in = x.shape
    assert c_in == params["c_in"], (c_in, params["c_in"])

    w = params["w"]                       # (kp, np_) in compute_dtype
    b = params["b"]                       # (1, np_) f32 or None
    kp, np_ = w.shape
    tn, tk = params["tn"], params["tk"]
    cdt = params["compute_dtype"]
    out_dtype = x.dtype
    has_bias = b is not None
    acc_in_out = jnp.dtype(out_dtype) == jnp.dtype(jnp.float32)

    # Rows: multiples of 16 (bf16 sublane packing); pick tm so B stays one
    # tile when small (operand fully resident), ~512-row tiles when large.
    mp = _round_up(B, 16)
    n_m_tiles = pl.cdiv(mp, tm_hint)
    tm = _round_up(pl.cdiv(mp, n_m_tiles), 16)
    mp = _round_up(mp, tm)

    # v7x megacore: if the (M, N) tile space would be a single tile, split N
    # so both TensorCores get work (dimension_semantics 'parallel' on M/N).
    if mp == tm and np_ == tn and tn >= 256:
        tn = _split_tile(tn)

    inv_sqrt = 1.0 / (float(c_in) ** 0.5)
    grid = (mp // tm, np_ // tn, kp // tk)

    # Per-call x prep only: cast to compute dtype and pad rows / lanes.
    x_p = x.astype(cdt)
    if mp != B or kp != c_in:
        x_p = jnp.pad(x_p, ((0, mp - B), (0, kp - c_in)))

    in_specs = [pl.BlockSpec((tm, tk), lambda i, j, k: (i, k)),
                pl.BlockSpec((tk, tn), lambda i, j, k: (k, j))]
    inputs = [x_p, w]
    if has_bias:
        in_specs.append(pl.BlockSpec((1, tn), lambda i, j, k: (0, j)))
        inputs.append(b)
    o_spec = pl.BlockSpec((tm, tn), lambda i, j, k: (i, j))

    scratch_shapes = [] if acc_in_out else [pltpu.VMEM((tm, tn), jnp.float32)]

    # VMEM budget: double-buffered inputs/outputs (+ scratch) + headroom.
    cbytes = jnp.dtype(cdt).itemsize
    obytes = jnp.dtype(out_dtype).itemsize
    total = 2 * (tm * tk * cbytes + tk * tn * cbytes + tm * tn * obytes)
    if has_bias:
        total += 2 * tn * 4
    if not acc_in_out:
        total += tm * tn * 4
    vmem_limit = int(min(max(total + (4 << 20), 32 << 20), 64 << 20))

    kernel = functools.partial(_linear1d_kernel, inv_sqrt=inv_sqrt,
                               has_bias=has_bias, acc_in_out=acc_in_out)

    out_p = pl.pallas_call(
        kernel,
        out_shape=jax.ShapeDtypeStruct((mp, np_), out_dtype),
        grid_spec=pltpu.PrefetchScalarGridSpec(
            num_scalar_prefetch=0,
            grid=grid,
            in_specs=in_specs,
            out_specs=o_spec,
            scratch_shapes=scratch_shapes),
        compiler_params=pltpu.CompilerParams(
            dimension_semantics=("parallel", "parallel", "arbitrary"),
            vmem_limit_bytes=vmem_limit),
    )(*inputs)

    return out_p[:B, :params["c_out"]]


def linear1d(x, weight, bias=None, *, compute_dtype=jnp.bfloat16):
    """Convenience one-shot wrapper (prep + apply). For repeated calls, do the
    prep once with prepare_linear1d_params and call linear1d_apply per step."""
    params = prepare_linear1d_params(weight, bias, compute_dtype=compute_dtype)
    return linear1d_apply(x, params)


def _reference(x, weight, bias=None):
    # Pure-JAX mirror of the PyTorch forward (broadcast-mul-sum == matmul).
    out = jnp.dot(x.astype(jnp.float32), weight.astype(jnp.float32).T)
    out = out / (x.shape[-1] ** 0.5)
    if bias is not None:
        out = out + bias.astype(jnp.float32) * 0.1
    return out


if __name__ == "__main__":
    key = jax.random.PRNGKey(0)
    k_x, k_w, k_b, k_x2, k_w2, k_b2 = jax.random.split(key, 6)

    # --- Small shapes matching the module's intent ---
    B, C_IN, C_OUT = 8, 32, 16
    x = jax.random.normal(k_x, (B, C_IN), dtype=jnp.float32)
    weight = jax.random.normal(k_w, (C_OUT, C_IN), dtype=jnp.float32)
    bias = jax.random.normal(k_b, (1, C_OUT), dtype=jnp.float32)

    # 1) bf16 operands (default), bias, f32 output (accumulate-in-output path)
    out_b = linear1d(x, weight, bias)
    jax.block_until_ready(out_b)
    ref_b = _reference(x, weight, bias)
    assert out_b.shape == (B, C_OUT)
    assert jnp.allclose(out_b, ref_b, atol=5e-2, rtol=5e-2)

    # 2) f32 operands, bias — exact-ish check of the kernel structure
    out_f32 = linear1d(x, weight, bias, compute_dtype=jnp.float32)
    jax.block_until_ready(out_f32)
    assert jnp.allclose(out_f32, ref_b, atol=1e-5, rtol=1e-5)

    # 3) bf16 operands, no bias
    out_nb = linear1d(x, weight, None)
    jax.block_until_ready(out_nb)
    ref_nb = _reference(x, weight, None)
    assert jnp.allclose(out_nb, ref_nb, atol=5e-2, rtol=5e-2)

    # 4) bf16 input -> bf16 output (f32 VMEM scratch accumulator path)
    out_bf = linear1d(x.astype(jnp.bfloat16), weight, bias)
    jax.block_until_ready(out_bf)
    assert out_bf.dtype == jnp.bfloat16
    assert jnp.allclose(out_bf.astype(jnp.float32), ref_b, atol=6e-2, rtol=6e-2)

    # --- Medium shapes: exercise multi-tile N grid + prep/apply split ---
    B2, C_IN2, C_OUT2 = 300, 640, 384
    x2 = jax.random.normal(k_x2, (B2, C_IN2), dtype=jnp.float32)
    w2 = jax.random.normal(k_w2, (C_OUT2, C_IN2), dtype=jnp.float32)
    b2 = jax.random.normal(k_b2, (1, C_OUT2), dtype=jnp.float32)
    params2 = prepare_linear1d_params(w2, b2)           # one-time prep
    out2 = linear1d_apply(x2, params2)
    jax.block_until_ready(out2)
    ref2 = _reference(x2, w2, b2)
    assert out2.shape == (B2, C_OUT2)
    assert jnp.allclose(out2, ref2, atol=6e-2, rtol=6e-2)

    print("KERNEL_OK")
</pallas_src>

<mosaic_0001>
module attributes {stable_mosaic.version = 11 : i64} {
  func.func @_linear1d_kernel(%arg0: i32, %arg1: i32, %arg2: i32, %arg3: memref<16x128xbf16, #tpu.memory_space<vmem>>, %arg4: memref<128x128xbf16, #tpu.memory_space<vmem>>, %arg5: memref<1x128xf32, #tpu.memory_space<vmem>>, %arg6: memref<16x128xf32, #tpu.memory_space<vmem>>) attributes {dimension_semantics = [#tpu.dimension_semantics<parallel>, #tpu.dimension_semantics<parallel>, #tpu.dimension_semantics<arbitrary>], iteration_bounds = array<i64: 1, 1, 1>, scalar_prefetch = 0 : i64, scratch_operands = 0 : i64, tpu.core_type = #tpu.core_type<tc>, window_params = [{transform_indices = @transform_0, window_bounds = array<i64: 16, 128>}, {transform_indices = @transform_1, window_bounds = array<i64: 128, 128>}, {transform_indices = @transform_2, window_bounds = array<i64: 1, 128>}, {transform_indices = @transform_3, window_bounds = array<i64: 16, 128>}]} {
    %c0_i32 = arith.constant 0 : i32
    %0 = arith.cmpi eq, %arg2, %c0_i32 : i32
    %1 = arith.extui %0 : i1 to i32
    %c0_i32_0 = arith.constant 0 : i32
    %2 = arith.cmpi ne, %1, %c0_i32_0 : i32
    scf.if %2 {
      %cst_10 = arith.constant 0.000000e+00 : f32
      %12 = vector.broadcast %cst_10 : f32 to vector<16x128xf32>
      %c0_11 = arith.constant 0 : index
      %c0_12 = arith.constant 0 : index
      %13 = vector.load %arg6[%c0_11, %c0_12] : memref<16x128xf32, #tpu.memory_space<vmem>>, vector<16x128xf32>
      tpu.vector_store %arg6[%c0_11, %c0_12], %12 {strides = array<i32>} : memref<16x128xf32, #tpu.memory_space<vmem>>, vector<16x128xf32>,
    } else {
    }
    %c0 = arith.constant 0 : index
    %c0_1 = arith.constant 0 : index
    %3 = vector.load %arg6[%c0, %c0_1] : memref<16x128xf32, #tpu.memory_space<vmem>>, vector<16x128xf32>
    %c0_2 = arith.constant 0 : index
    %c0_3 = arith.constant 0 : index
    %4 = vector.load %arg3[%c0_2, %c0_3] : memref<16x128xbf16, #tpu.memory_space<vmem>>, vector<16x128xbf16>
    %c0_4 = arith.constant 0 : index
    %c0_5 = arith.constant 0 : index
    %5 = vector.load %arg4[%c0_4, %c0_5] : memref<128x128xbf16, #tpu.memory_space<vmem>>, vector<128x128xbf16>
    %cst = arith.constant dense<0.000000e+00> : vector<16x128xf32>
    %6 = tpu.matmul %4, %5, %cst {dimension_numbers = #tpu.dot_dimension_numbers<[1], [0], [0], [1], [0, 0, 1, 1], [], []>} : vector<16x128xbf16>, vector<128x128xbf16>, vector<16x128xf32> -> vector<16x128xf32>
    %7 = arith.addf %3, %6 : vector<16x128xf32>
    %c0_6 = arith.constant 0 : index
    %c0_7 = arith.constant 0 : index
    %8 = vector.load %arg6[%c0_6, %c0_7] : memref<16x128xf32, #tpu.memory_space<vmem>>, vector<16x128xf32>
    tpu.vector_store %arg6[%c0_6, %c0_7], %7 {strides = array<i32>} : memref<16x128xf32, #tpu.memory_space<vmem>>, vector<16x128xf32>,
    %c0_i32_8 = arith.constant 0 : i32
    %9 = arith.cmpi eq, %arg2, %c0_i32_8 : i32
    %10 = arith.extui %9 : i1 to i32
    %c0_i32_9 = arith.constant 0 : i32
    %11 = arith.cmpi ne, %10, %c0_i32_9 : i32
    scf.if %11 {
      %c0_10 = arith.constant 0 : index
      %c0_11 = arith.constant 0 : index
      %12 = vector.load %arg6[%c0_10, %c0_11] : memref<16x128xf32, #tpu.memory_space<vmem>>, vector<16x128xf32>
      %cst_12 = arith.constant 0.176776692 : f32
      %13 = vector.broadcast %cst_12 : f32 to vector<16x128xf32>
      %14 = arith.mulf %12, %13 : vector<16x128xf32>
      %c0_13 = arith.constant 0 : index
      %c0_14 = arith.constant 0 : index
      %15 = vector.load %arg5[%c0_13, %c0_14] : memref<1x128xf32, #tpu.memory_space<vmem>>, vector<1x128xf32>
      %16 = vector.broadcast %15 : vector<1x128xf32> to vector<16x128xf32>
      %17 = arith.addf %14, %16 : vector<16x128xf32>
      %c0_15 = arith.constant 0 : index
      %c0_16 = arith.constant 0 : index
      %18 = vector.load %arg6[%c0_15, %c0_16] : memref<16x128xf32, #tpu.memory_space<vmem>>, vector<16x128xf32>
      tpu.vector_store %arg6[%c0_15, %c0_16], %17 {strides = array<i32>} : memref<16x128xf32, #tpu.memory_space<vmem>>, vector<16x128xf32>,
    } else {
    }
    return
  }
  func.func @transform_0(%arg0: i32, %arg1: i32, %arg2: i32) -> (i32, i32) {
    %c0_i32 = arith.constant 0 : i32
    return %arg0, %arg2 : i32, i32
  }
  func.func @transform_1(%arg0: i32, %arg1: i32, %arg2: i32) -> (i32, i32) {
    %c0_i32 = arith.constant 0 : i32
    return %arg2, %arg1 : i32, i32
  }
  func.func @transform_2(%arg0: i32, %arg1: i32, %arg2: i32) -> (i32, i32) {
    %c0_i32 = arith.constant 0 : i32
    %c0_i32_0 = arith.constant 0 : i32
    return %c0_i32, %arg1 : i32, i32
  }
  func.func @transform_3(%arg0: i32, %arg1: i32, %arg2: i32) -> (i32, i32) {
    %c0_i32 = arith.constant 0 : i32
    return %arg0, %arg1 : i32, i32
  }
}

</mosaic_0001>

<llo_original>
// kernel: tpu_custom_call.1
$region0: #{tpu_custom_call.1}
  #allocation0 [shape = 'u32[]', space=smem, size = 0x4, offset = 0x4, fixed_abs, tag = 'smem constant byte address 0x4 - core index']
  #allocation1 [shape = 'u32[72,128]{1,0:T(1,128)}', space=vmem, size = 0x9000, scoped, tag = 'internal scratch']
  %s0 = inlined_call_operand.hbm [shape: bf16[16,128], index: 0, kind: input, shape index: {}]
  %s1 = inlined_call_operand.hbm [shape: bf16[128,128], index: 1, kind: input, shape index: {}]
  %s2 = inlined_call_operand.vmem [shape: f32[1,128], index: 2, kind: input, shape index: {}]
  %s3 = inlined_call_operand.hbm [shape: f32[16,128], index: 3, kind: output, shape index: {}]
  %s4 = sld [smem:[#allocation0]]
  $region38: #{tpu_custom_call.1} parent=0
    _
  %s6 = ssub.s32 1, %s4
  %s7 = scalar_select 0, %s6, %s4
  $region1: #{tpu_custom_call.1} parent=0
    #allocation2 [shape = 'u8[4096]{0}', space=vmem, size = 0x1000, scoped, tag = 'input window, operand 0, single buffered']
    #allocation3 [shape = 's32[1]{0}', space=sflag, size = 0x4, scoped, tag = 'scoped memory for tpu_custom_call.1']
    #allocation4 [shape = 's32[1]{0}', space=sflag, size = 0x4, scoped, tag = 'scoped memory for tpu_custom_call.1']
    #allocation5 [shape = 'u8[32768]{0}', space=vmem, size = 0x8000, scoped, tag = 'input window, operand 1, single buffered']
    #allocation6 [shape = 's32[1]{0}', space=sflag, size = 0x4, scoped, tag = 'scoped memory for tpu_custom_call.1']
    #allocation7 [shape = 'u8[8192]{0}', space=vmem, size = 0x2000, scoped, tag = 'output window, operand 0, single buffered']
    %8 = vsyncpa [#allocation3], 0
    %9 = vsyncpa [#allocation6], 0
    %10 = vsyncpa [#allocation4], 0
    // Predicated region
    $region2: #{tpu_custom_call.1} parent=1 // pred_check
      _
    $region3: #{tpu_custom_call.1} parent=1 // pred_check_branch
      %12 = sbr.rel (0) target = $region5
    $region4: #{tpu_custom_call.1} parent=1 // pred_region
      %14 = vsyncadd [#allocation3], 0
      %s15 = sshll.u32 %s0, 4
      %s16 = int_to_ptr.hbm [resolvable:$true] %s15
      %s17 = sshll.u32 [#allocation2], 4
      %s18 = int_to_ptr.vmem [resolvable:$true] %s17
      %23 = dma.hbm_to_vmem [thread:$0]  %s16, 128, %s18, [#allocation3], 64, 64, 4
    $region5: #{tpu_custom_call.1} parent=1 // pred_fallthru
      _
    // Predicated region
    $region6: #{tpu_custom_call.1} parent=1 // pred_check
      _
    $region7: #{tpu_custom_call.1} parent=1 // pred_check_branch
      %25 = sbr.rel (0) target = $region9
    $region8: #{tpu_custom_call.1} parent=1 // pred_region
      %27 = vsyncadd [#allocation6], 0
      %s28 = sshll.u32 %s1, 4
      %s29 = int_to_ptr.hbm [resolvable:$true] %s28
      %s30 = sshll.u32 [#allocation5], 4
      %s31 = int_to_ptr.vmem [resolvable:$true] %s30
      %36 = dma.hbm_to_vmem [thread:$0]  %s29, 1024, %s31, [#allocation6], 64, 64, 4
    $region9: #{tpu_custom_call.1} parent=1 // pred_fallthru
      _
    // Predicated region
    $region10: #{tpu_custom_call.1} parent=1 // pred_check
      _
    $region11: #{tpu_custom_call.1} parent=1 // pred_check_branch
      %38 = sbr.rel (0) target = $region13
    $region12: #{tpu_custom_call.1} parent=1 // pred_region
      _
    $region13: #{tpu_custom_call.1} parent=1 // pred_fallthru
      _
    // Predicated region
    $region14: #{tpu_custom_call.1} parent=1 // pred_check
      _
    $region15: #{tpu_custom_call.1} parent=1 // pred_check_branch
      %40 = sbr.rel (0) target = $region17
    $region16: #{tpu_custom_call.1} parent=1 // pred_region
      %42 = dma.done [#allocation3], 128
    $region17: #{tpu_custom_call.1} parent=1 // pred_fallthru
      _
    // Predicated region
    $region18: #{tpu_custom_call.1} parent=1 // pred_check
      _
    $region19: #{tpu_custom_call.1} parent=1 // pred_check_branch
      %44 = sbr.rel (0) target = $region21
    $region20: #{tpu_custom_call.1} parent=1 // pred_region
      %46 = dma.done [#allocation6], 1024
    $region21: #{tpu_custom_call.1} parent=1 // pred_fallthru
      _
    %p47 = scmp.eq.s32.totalorder 0, 0
    // Predicated region
    $region22: #{tpu_custom_call.1} parent=1 // pred_check
      %p48 = pneg %p47
    $region23: #{tpu_custom_call.1} parent=1 // pred_check_branch
      %50 = sbr.rel (%p48) target = $region25
    $region24: #{tpu_custom_call.1} parent=1 // pred_region
      %51 = vst [vmem:[#allocation7] sm:$0xff] 0.0
      %52 = vst [vmem:[#allocation7 + $0x8] sm:$0xff] 0.0
    $region25: #{tpu_custom_call.1} parent=1 // pred_fallthru
      _
    %v53 = vld [vmem:[#allocation7] sm:$0xff]
    %v54 = vld [vmem:[#allocation7 + $0x8] sm:$0xff]
    %v55 = vld [vmem:[#allocation2] sm:$0xf]
    %v56 = vld [vmem:[#allocation2 + $0x4] sm:$0xf]
    %v57 = vld [vmem:[#allocation5] sm:$0xf]
    %v58 = vld [vmem:[#allocation5 + $0x4] sm:$0xf]
    %v59 = vld [vmem:[#allocation5 + $0x8] sm:$0xf]
    %v60 = vld [vmem:[#allocation5 + $0xc] sm:$0xf]
    %v61 = vld [vmem:[#allocation5 + $0x10] sm:$0xf]
    %v62 = vld [vmem:[#allocation5 + $0x14] sm:$0xf]
    %v63 = vld [vmem:[#allocation5 + $0x18] sm:$0xf]
    %v64 = vld [vmem:[#allocation5 + $0x1c] sm:$0xf]
    %v65 = vld [vmem:[#allocation5 + $0x20] sm:$0xf]
    %v66 = vld [vmem:[#allocation5 + $0x24] sm:$0xf]
    %v67 = vld [vmem:[#allocation5 + $0x28] sm:$0xf]
    %v68 = vld [vmem:[#allocation5 + $0x2c] sm:$0xf]
    %v69 = vld [vmem:[#allocation5 + $0x30] sm:$0xf]
    %v70 = vld [vmem:[#allocation5 + $0x34] sm:$0xf]
    %v71 = vld [vmem:[#allocation5 + $0x38] sm:$0xf]
    %v72 = vld [vmem:[#allocation5 + $0x3c] sm:$0xf]
    %v75 = vunpack.c.l.b16 %v55
    %v76 = vunpack.c.l.b16 %v56
    %v77 = vpack.c.b16 %v76, %v75
    %v95 = vunpack.c.l.b16 %v57
    %v96 = vunpack.c.l.b16 %v58
    %v97 = vunpack.c.l.b16 %v59
    %v98 = vunpack.c.l.b16 %v60
    %v99 = vunpack.c.l.b16 %v61
    %v100 = vunpack.c.l.b16 %v62
    %v101 = vunpack.c.l.b16 %v63
    %v102 = vunpack.c.l.b16 %v64
    %v103 = vunpack.c.l.b16 %v65
    %v104 = vunpack.c.l.b16 %v66
    %v105 = vunpack.c.l.b16 %v67
    %v106 = vunpack.c.l.b16 %v68
    %v107 = vunpack.c.l.b16 %v69
    %v108 = vunpack.c.l.b16 %v70
    %v109 = vunpack.c.l.b16 %v71
    %v110 = vunpack.c.l.b16 %v72
    %v111 = vpack.c.b16 %v96, %v95
    %v112 = vpack.c.b16 %v98, %v97
    %v113 = vpack.c.b16 %v100, %v99
    %v114 = vpack.c.b16 %v102, %v101
    %v115 = vpack.c.b16 %v104, %v103
    %v116 = vpack.c.b16 %v106, %v105
    %v117 = vpack.c.b16 %v108, %v107
    %v118 = vpack.c.b16 %v110, %v109
    %127 = vmatpush.bf16.msra.mxu0 %v118
    %128 = vmatpush.bf16.msra.mxu0 %v117
    %129 = vmatpush.bf16.msra.mxu0 %v116
    %130 = vmatpush.bf16.msra.mxu0 %v115
    %131 = vmatpush.bf16.msra.mxu0 %v114
    %132 = vmatpush.bf16.msra.mxu0 %v113
    %133 = vmatpush.bf16.msra.mxu0 %v112
    %134 = vmatpush.bf16.msra.mxu0 %v111
    %135 = vmatmul.bf16.gmra.mxu0 %v77
    %v136 = vpop.f32.mrf.mxu0
    %v137 = vadd.f32 0.0, %v136
    %v138 = vpop.f32.mrf.mxu0
    %v139 = vadd.f32 0.0, %v138
    %140 = vdwg.mxu0
    %v141 = vadd.f32 %v53, %v137
    %v142 = vadd.f32 %v54, %v139
    %143 = vst [vmem:[#allocation7] sm:$0xff] %v141
    %144 = vst [vmem:[#allocation7 + $0x8] sm:$0xff] %v142
    // Predicated region
    $region26: #{tpu_custom_call.1} parent=1 // pred_check
      %p145 = pneg %p47
    $region27: #{tpu_custom_call.1} parent=1 // pred_check_branch
      %147 = sbr.rel (%p145) target = $region29
    $region28: #{tpu_custom_call.1} parent=1 // pred_region
      %v148 = vld [vmem:[#allocation7] sm:$0xff]
      %v149 = vld [vmem:[#allocation7 + $0x8] sm:$0xff]
      %v150 = vmul.f32 %v148, 0.17677669
      %v151 = vmul.f32 %v149, 0.17677669
      %v152 = vld [vmem:[%s2] sm:$0x1]
      %v154 = vperm.slane %v152, 0
      %v156 = vadd.f32 %v150, %v154
      %v157 = vadd.f32 %v151, %v154
      %158 = vst [vmem:[#allocation7] sm:$0xff] %v156
      %159 = vst [vmem:[#allocation7 + $0x8] sm:$0xff] %v157
    $region29: #{tpu_custom_call.1} parent=1 // pred_fallthru
      _
    // Predicated region
    $region30: #{tpu_custom_call.1} parent=1 // pred_check
      _
    $region31: #{tpu_custom_call.1} parent=1 // pred_check_branch
      %161 = sbr.rel (0) target = $region33
    $region32: #{tpu_custom_call.1} parent=1 // pred_region
      %163 = vsyncadd [#allocation4], 0
      %s164 = sshll.u32 [#allocation7], 4
      %s165 = int_to_ptr.vmem [resolvable:$true] %s164
      %s166 = sshll.u32 %s3, 4
      %s167 = int_to_ptr.hbm [resolvable:$true] %s166
      %172 = dma.vmem_to_hbm [thread:$0]  %s165, 256, %s167, [#allocation4], 128, 128, 8
    $region33: #{tpu_custom_call.1} parent=1 // pred_fallthru
      _
    // Predicated region
    $region34: #{tpu_custom_call.1} parent=1 // pred_check
      _
    $region35: #{tpu_custom_call.1} parent=1 // pred_check_branch
      %174 = sbr.rel (0) target = $region37
    $region36: #{tpu_custom_call.1} parent=1 // pred_region
      %176 = dma.done [#allocation4], 256
    $region37: #{tpu_custom_call.1} parent=1 // pred_fallthru
      _
    %177 = vsyncpa [#allocation3], 1
    %178 = vsyncpa [#allocation6], 1
    %179 = vsyncpa [#allocation4], 1

</llo_original>
